<compile_context>
chip_gen: v6e
topology: v6e:2x2x1
jax: 0.10.0
libtpu: 0.0.40
codegen_flags: <defaults>
</compile_context>

<pallas_src>
import jax
import jax.numpy as jnp
from jax.experimental import pallas as pl
from jax.experimental.pallas import tpu as pltpu


def _make_kernel(n_total: int, tn: int, blocks_per_part: int):
    def kernel(logits_ref, aux_ref, out_ref):
        p = pl.program_id(0)          # partition (parallel axis, megacore on v7x)
        i = pl.program_id(1)          # block within partition (reduction axis)

        # init this partition's resident accumulator block at its first step
        @pl.when(i == 0)
        def _():
            out_ref[...] = jnp.zeros(out_ref.shape, jnp.float32)

        logits = logits_ref[...].astype(jnp.float32)     # (TN, C)
        aux = aux_ref[...]                               # (TN, 2) f32
        logit_t = aux[:, 0:1]                            # (TN, 1) target logit
        w_row = aux[:, 1:2]                              # (TN, 1) class weight

        # logical (un-clamped) block index -> tail / out-of-range row masking
        blk = p * blocks_per_part + i
        row_idx = blk * tn + jax.lax.broadcasted_iota(jnp.int32, (tn, 1), 0)
        row_valid = row_idx < n_total                    # (TN, 1) bool

        # row-wise softmax pieces: only the denominator needs the full row
        m = jnp.max(logits, axis=1, keepdims=True)               # (TN, 1)
        denom = jnp.sum(jnp.exp(logits - m), axis=1, keepdims=True)  # (TN, 1)

        p_t = jnp.exp(logit_t - m) / denom               # softmax(logits)[i, tgt_i]
        per_row = -w_row * jnp.log(p_t + 1e-5)           # (TN, 1)
        # select (not multiply): garbage-padded rows must not poison the sum
        per_row = jnp.where(row_valid, per_row, 0.0)

        # broadcast the (1,1) partial over the lane-dense (8,128) block
        out_ref[...] += jnp.sum(per_row, axis=0, keepdims=True)

    return kernel


def _pick_block_rows(n, c, itemsize, block_rows=None):
    if block_rows is None:
        # Size by the lane-padded VMEM footprint: logits pad to c_pad lanes,
        # the (TN,2) aux tile pads to 128 lanes of f32; both double-buffered.
        c_pad = ((c + 127) // 128) * 128
        per_row = 2 * (c_pad * itemsize + 128 * 4)
        budget = 24 * 1024 * 1024                # fits v7x scoped VMEM w/ headroom
        tn = max(32, budget // per_row)
    else:
        tn = block_rows
    # keep tn a multiple of 32 (sublane packing for bf16/int8 logits)
    if tn >= 32:
        tn = (tn // 32) * 32
    else:
        tn = max(8, (tn // 8) * 8)
    if n <= tn:
        return n                                 # single full-extent block
    return tn


def categorical_cross_entropy_loss(logits, target, class_weights, *, block_rows=None):
    """logits (N, C), target (N,) int, class_weights (C,) -> scalar f32 loss."""
    n, c = logits.shape
    target = target.astype(jnp.int32)

    # wrapper-side gathers (removes the one-hot select path from the kernel)
    logit_t = jnp.take_along_axis(logits, target[:, None], axis=1).astype(jnp.float32)
    w_row = class_weights.astype(jnp.float32)[target][:, None]
    aux = jnp.concatenate([logit_t, w_row], axis=1)      # (N, 2) f32

    tn = _pick_block_rows(n, c, jnp.dtype(logits.dtype).itemsize, block_rows)
    total_blocks = pl.cdiv(n, tn)
    num_parts = 2 if total_blocks >= 2 else 1            # 2 TCs on v7x
    blocks_per_part = pl.cdiv(total_blocks, num_parts)
    last_blk = total_blocks - 1

    def in_map(p, i):
        # clamp fully out-of-range steps onto the last real block; their rows
        # are masked in-kernel via the un-clamped logical block index
        blk = jnp.minimum(p * blocks_per_part + i, last_blk)
        return (blk, 0)

    out = pl.pallas_call(
        _make_kernel(n, tn, blocks_per_part),
        out_shape=jax.ShapeDtypeStruct((num_parts * 8, 128), jnp.float32),
        grid=(num_parts, blocks_per_part),
        in_specs=[
            pl.BlockSpec((tn, c), in_map),               # logits tile (native dtype)
            pl.BlockSpec((tn, 2), in_map),               # packed [target logit, weight]
        ],
        out_specs=pl.BlockSpec((8, 128), lambda p, i: (p, 0)),  # per-partition block
        compiler_params=pltpu.CompilerParams(
            dimension_semantics=("parallel", "arbitrary"),
            vmem_limit_bytes=48 * 1024 * 1024,           # covers v5e's 16 MiB default
        ),
    )(logits, aux)

    # per-partition f32 partials reduced in the wrapper; mean done here too
    partials = out.reshape(num_parts, 8, 128)[:, 0, 0]
    return jnp.sum(partials) / jnp.float32(n)


def _reference(logits, target, class_weights):
    prob = jax.nn.softmax(logits, axis=1)
    one_hot = jax.nn.one_hot(target, logits.shape[1], dtype=jnp.float32)
    w = class_weights[target]
    return jnp.mean(jnp.sum(-jnp.log(prob + 1e-5) * one_hot * w[:, None], axis=1))


if __name__ == "__main__":
    key = jax.random.PRNGKey(0)
    k1, k2, k3, k4 = jax.random.split(key, 4)

    # --- test 1: module defaults (3 classes, uniform weights), single block ---
    N, C = 8, 3
    logits = jax.random.normal(k1, (N, C), dtype=jnp.float32)
    target = jax.random.randint(k2, (N,), 0, C, dtype=jnp.int32)
    class_weights = jnp.ones((C,), dtype=jnp.float32)

    loss = categorical_cross_entropy_loss(logits, target, class_weights)
    jax.block_until_ready(loss)
    ref = _reference(logits, target, class_weights)
    assert jnp.allclose(loss, ref, atol=1e-5, rtol=1e-5), (loss, ref)

    # --- test 2: two-partition grid, multi-block reduction with tail masking ---
    N2, C2 = 1000, 5
    logits2 = jax.random.normal(k3, (N2, C2), dtype=jnp.float32)
    target2 = jax.random.randint(k4, (N2,), 0, C2, dtype=jnp.int32)
    weights2 = jnp.array([0.5, 1.0, 2.0, 1.5, 0.25], dtype=jnp.float32)

    loss2 = categorical_cross_entropy_loss(logits2, target2, weights2, block_rows=128)
    jax.block_until_ready(loss2)
    ref2 = _reference(logits2, target2, weights2)
    assert jnp.allclose(loss2, ref2, atol=1e-5, rtol=1e-5), (loss2, ref2)

    # --- test 3: odd block count -> one fully out-of-range (clamped+masked) step ---
    loss3 = categorical_cross_entropy_loss(logits2, target2, weights2, block_rows=384)
    jax.block_until_ready(loss3)
    assert jnp.allclose(loss3, ref2, atol=1e-5, rtol=1e-5), (loss3, ref2)

    print("KERNEL_OK")
</pallas_src>

<mosaic_0001>
module attributes {stable_mosaic.version = 11 : i64} {
  func.func @kernel(%arg0: i32, %arg1: i32, %arg2: memref<8x3xf32, #tpu.memory_space<vmem>>, %arg3: memref<8x2xf32, #tpu.memory_space<vmem>>, %arg4: memref<8x128xf32, #tpu.memory_space<vmem>>) attributes {dimension_semantics = [#tpu.dimension_semantics<parallel>, #tpu.dimension_semantics<arbitrary>], iteration_bounds = array<i64: 1, 1>, scalar_prefetch = 0 : i64, scratch_operands = 0 : i64, tpu.core_type = #tpu.core_type<tc>, window_params = [{transform_indices = @transform_0, window_bounds = array<i64: 8, 3>}, {transform_indices = @transform_1, window_bounds = array<i64: 8, 2>}, {transform_indices = @transform_2, window_bounds = array<i64: 8, 128>}]} {
    %c0_i32 = arith.constant 0 : i32
    %0 = arith.cmpi eq, %arg1, %c0_i32 : i32
    %1 = arith.extui %0 : i1 to i32
    %c0_i32_0 = arith.constant 0 : i32
    %2 = arith.cmpi ne, %1, %c0_i32_0 : i32
    scf.if %2 {
      %cst_14 = arith.constant 0.000000e+00 : f32
      %39 = vector.broadcast %cst_14 : f32 to vector<8x128xf32>
      %c0_15 = arith.constant 0 : index
      %c0_16 = arith.constant 0 : index
      %40 = vector.load %arg4[%c0_15, %c0_16] : memref<8x128xf32, #tpu.memory_space<vmem>>, vector<8x128xf32>
      tpu.vector_store %arg4[%c0_15, %c0_16], %39 {strides = array<i32>} : memref<8x128xf32, #tpu.memory_space<vmem>>, vector<8x128xf32>,
    } else {
    }
    %c0 = arith.constant 0 : index
    %c0_1 = arith.constant 0 : index
    %3 = vector.load %arg2[%c0, %c0_1] : memref<8x3xf32, #tpu.memory_space<vmem>>, vector<8x3xf32>
    %c0_2 = arith.constant 0 : index
    %c0_3 = arith.constant 0 : index
    %4 = vector.load %arg3[%c0_2, %c0_3] : memref<8x2xf32, #tpu.memory_space<vmem>>, vector<8x2xf32>
    %5 = vector.extract_strided_slice %4 {offsets = [0, 0], sizes = [8, 1], strides = [1, 1]} : vector<8x2xf32> to vector<8x1xf32>
    %6 = vector.extract_strided_slice %4 {offsets = [0, 1], sizes = [8, 1], strides = [1, 1]} : vector<8x2xf32> to vector<8x1xf32>
    %c1_i32 = arith.constant 1 : i32
    %7 = arith.muli %arg0, %c1_i32 : i32
    %8 = arith.addi %7, %arg1 : i32
    %c8_i32 = arith.constant 8 : i32
    %9 = arith.muli %8, %c8_i32 : i32
    %10 = tpu.iota {dimensions = array<i32: 0>} : vector<8x1xi32>
    %11 = vector.broadcast %9 : i32 to vector<8x1xi32>
    %12 = arith.addi %11, %10 : vector<8x1xi32>
    %c8_i32_4 = arith.constant 8 : i32
    %13 = vector.broadcast %c8_i32_4 : i32 to vector<8x1xi32>
    %14 = arith.cmpi slt, %12, %13 : vector<8x1xi32>
    %cst = arith.constant dense<0xFF800000> : vector<8xf32>
    %15 = vector.multi_reduction <maximumf>, %3, %cst [1] : vector<8x3xf32> to vector<8xf32>
    %16 = vector.shape_cast %15 : vector<8xf32> to vector<8x1xf32>
    %17 = vector.broadcast %16 : vector<8x1xf32> to vector<8x3xf32>
    %18 = arith.subf %3, %17 : vector<8x3xf32>
    %19 = math.exp %18 : vector<8x3xf32>
    %cst_5 = arith.constant dense<0.000000e+00> : vector<8xf32>
    %20 = vector.multi_reduction <add>, %19, %cst_5 [1] : vector<8x3xf32> to vector<8xf32>
    %21 = vector.shape_cast %20 : vector<8xf32> to vector<8x1xf32>
    %22 = arith.subf %5, %16 : vector<8x1xf32>
    %23 = math.exp %22 : vector<8x1xf32>
    %24 = arith.divf %23, %21 : vector<8x1xf32>
    %cst_6 = arith.constant 0.000000e+00 : f32
    %25 = vector.broadcast %cst_6 : f32 to vector<8x1xf32>
    %26 = arith.subf %25, %6 : vector<8x1xf32>
    %cst_7 = arith.constant 9.99999974E-6 : f32
    %27 = vector.broadcast %cst_7 : f32 to vector<8x1xf32>
    %28 = arith.addf %24, %27 : vector<8x1xf32>
    %29 = math.log %28 : vector<8x1xf32>
    %30 = arith.mulf %26, %29 : vector<8x1xf32>
    %cst_8 = arith.constant 0.000000e+00 : f32
    %31 = vector.broadcast %cst_8 : f32 to vector<8x1xf32>
    %32 = arith.select %14, %30, %31 : vector<8x1xi1>, vector<8x1xf32>
    %c0_9 = arith.constant 0 : index
    %c0_10 = arith.constant 0 : index
    %33 = vector.load %arg4[%c0_9, %c0_10] : memref<8x128xf32, #tpu.memory_space<vmem>>, vector<8x128xf32>
    %cst_11 = arith.constant dense<0.000000e+00> : vector<1xf32>
    %34 = vector.multi_reduction <add>, %32, %cst_11 [0] : vector<8x1xf32> to vector<1xf32>
    %35 = vector.shape_cast %34 : vector<1xf32> to vector<1x1xf32>
    %36 = vector.broadcast %35 : vector<1x1xf32> to vector<8x128xf32>
    %37 = arith.addf %33, %36 : vector<8x128xf32>
    %c0_12 = arith.constant 0 : index
    %c0_13 = arith.constant 0 : index
    %38 = vector.load %arg4[%c0_12, %c0_13] : memref<8x128xf32, #tpu.memory_space<vmem>>, vector<8x128xf32>
    tpu.vector_store %arg4[%c0_12, %c0_13], %37 {strides = array<i32>} : memref<8x128xf32, #tpu.memory_space<vmem>>, vector<8x128xf32>,
    return
  }
  func.func @transform_0(%arg0: i32, %arg1: i32) -> (i32, i32) {
    %c1_i32 = arith.constant 1 : i32
    %0 = arith.muli %arg0, %c1_i32 : i32
    %1 = arith.addi %0, %arg1 : i32
    %c0_i32 = arith.constant 0 : i32
    %2 = arith.minsi %1, %c0_i32 : i32
    %c0_i32_0 = arith.constant 0 : i32
    %c0_i32_1 = arith.constant 0 : i32
    return %2, %c0_i32_0 : i32, i32
  }
  func.func @transform_1(%arg0: i32, %arg1: i32) -> (i32, i32) {
    %c1_i32 = arith.constant 1 : i32
    %0 = arith.muli %arg0, %c1_i32 : i32
    %1 = arith.addi %0, %arg1 : i32
    %c0_i32 = arith.constant 0 : i32
    %2 = arith.minsi %1, %c0_i32 : i32
    %c0_i32_0 = arith.constant 0 : i32
    %c0_i32_1 = arith.constant 0 : i32
    return %2, %c0_i32_0 : i32, i32
  }
  func.func @transform_2(%arg0: i32, %arg1: i32) -> (i32, i32) {
    %c0_i32 = arith.constant 0 : i32
    %c0_i32_0 = arith.constant 0 : i32
    return %arg0, %c0_i32 : i32, i32
  }
}

</mosaic_0001>

<llo_original>
// kernel: tpu_custom_call.1
$region0: #{tpu_custom_call.1}
  #allocation0 [shape = 'u32[]', space=smem, size = 0x4, offset = 0x4, fixed_abs, tag = 'smem constant byte address 0x4 - core index']
  #allocation1 [shape = 'u32[144,128]{1,0:T(1,128)}', space=vmem, size = 0x12000, scoped, tag = 'internal scratch']
  %s0 = inlined_call_operand.vmem [shape: f32[8,3], index: 0, kind: input, shape index: {}]
  %s1 = inlined_call_operand.vmem [shape: f32[8,2], index: 1, kind: input, shape index: {}]
  %s2 = inlined_call_operand.hbm [shape: f32[8,128], index: 2, kind: output, shape index: {}]
  %s3 = sld [smem:[#allocation0]]
  $region22: #{tpu_custom_call.1} parent=0
    _
  %s5 = ssub.s32 1, %s3
  %s6 = scalar_select 0, %s5, %s3
  $region1: #{tpu_custom_call.1} parent=0
    #allocation2 [shape = 'u8[4096]{0}', space=vmem, size = 0x1000, scoped, tag = 'output window, operand 0, single buffered']
    #allocation3 [shape = 's32[1]{0}', space=sflag, size = 0x4, scoped, tag = 'scoped memory for tpu_custom_call.1']
    %7 = vsyncpa [#allocation3], 0
    // Predicated region
    $region2: #{tpu_custom_call.1} parent=1 // pred_check
      _
    $region3: #{tpu_custom_call.1} parent=1 // pred_check_branch
      %9 = sbr.rel (0) target = $region5
    $region4: #{tpu_custom_call.1} parent=1 // pred_region
      %s10 = sadd.s32 0, 0
      %p11 = scmp.lt.s32.totalorder %s10, 0
      %s12 = scalar_select %p11, %s10, 0
      %p13 = scmp.lt.s32.totalorder %s12, 0
      %s14 = scalar_select %p13, %s12, 0
      %s15 = smul.addr %s14, 8
      %s16 = scalar_lea.vmem %s0, %s15
      %s17 = sadd.s32 0, 0
      %p18 = scmp.lt.s32.totalorder %s17, 0
      %s19 = scalar_select %p18, %s17, 0
    $region5: #{tpu_custom_call.1} parent=1 // pred_fallthru
      _
    // Predicated region
    $region6: #{tpu_custom_call.1} parent=1 // pred_check
      _
    $region7: #{tpu_custom_call.1} parent=1 // pred_check_branch
      %21 = sbr.rel (0) target = $region9
    $region8: #{tpu_custom_call.1} parent=1 // pred_region
      %s22 = sadd.s32 0, 0
      %p23 = scmp.lt.s32.totalorder %s22, 0
      %s24 = scalar_select %p23, %s22, 0
      %p25 = scmp.lt.s32.totalorder %s24, 0
      %s26 = scalar_select %p25, %s24, 0
      %s27 = smul.addr %s26, 8
      %s28 = scalar_lea.vmem %s1, %s27
      %s29 = sadd.s32 0, 0
      %p30 = scmp.lt.s32.totalorder %s29, 0
      %s31 = scalar_select %p30, %s29, 0
    $region9: #{tpu_custom_call.1} parent=1 // pred_fallthru
      _
    %s32 = sadd.s32 0, 0
    %p33 = scmp.lt.s32.totalorder %s32, 0
    %s34 = scalar_select %p33, %s32, 0
    %p35 = scmp.lt.s32.totalorder %s34, 0
    %s36 = scalar_select %p35, %s34, 0
    %s37 = smul.addr %s36, 8
    %s38 = scalar_lea.vmem %s0, %s37
    %s39 = sadd.s32 0, 0
    %p40 = scmp.lt.s32.totalorder %s39, 0
    %s41 = scalar_select %p40, %s39, 0
    %p42 = scmp.lt.s32.totalorder %s41, 0
    %s43 = scalar_select %p42, %s41, 0
    %s44 = smul.addr %s43, 8
    %s45 = scalar_lea.vmem %s1, %s44
    %s46 = sadd.s32 0, 0
    %p47 = scmp.lt.s32.totalorder %s46, 0
    %s48 = scalar_select %p47, %s46, 0
    %p49 = scmp.lt.s32.totalorder %s48, 0
    %s50 = scalar_select %p49, %s48, 0
    %s51 = smul.addr %s50, 8
    %s52 = scalar_lea.vmem %s0, %s51
    %s53 = sadd.s32 0, 0
    %p54 = scmp.lt.s32.totalorder %s53, 0
    %s55 = scalar_select %p54, %s53, 0
    %s56 = sadd.s32 0, 0
    %p57 = scmp.lt.s32.totalorder %s56, 0
    %s58 = scalar_select %p57, %s56, 0
    %p59 = scmp.lt.s32.totalorder %s58, 0
    %s60 = scalar_select %p59, %s58, 0
    %s61 = smul.addr %s60, 8
    %s62 = scalar_lea.vmem %s1, %s61
    %s63 = sadd.s32 0, 0
    %p64 = scmp.lt.s32.totalorder %s63, 0
    %s65 = scalar_select %p64, %s63, 0
    %p66 = scmp.eq.s32.totalorder 0, 0
    // Predicated region
    $region10: #{tpu_custom_call.1} parent=1 // pred_check
      %p67 = pneg %p66
    $region11: #{tpu_custom_call.1} parent=1 // pred_check_branch
      %69 = sbr.rel (%p67) target = $region13
    $region12: #{tpu_custom_call.1} parent=1 // pred_region
      %70 = vst [vmem:[#allocation2] sm:$0xff] 0.0
    $region13: #{tpu_custom_call.1} parent=1 // pred_fallthru
      _
    %v71 = vld [vmem:[%s52] sm:$0xff]
    %v72 = vld [vmem:[%s62] sm:$0xff]
    %s73 = sadd.s32 0, 0
    %s74 = smul.u32 %s73, 8
    %v75 = vlaneseq
    %v76 = vshrl.u32 %v75, 7
    %v77 = vstv %s74
    %v78 = vadd.s32 %v77, %v76
    %vm79 = vcmp.lt.s32.totalorder %v78, 8
    %vm80 = vcmask 23552
    %v81 = vsel %vm80, %v71, -inf
    %82 = vmax.xlane.f32.xlu0 %v81
    %v83 = vpop.xlane.xlu0 %82
    %v84 = vsub.f32 %v71, %v83
    %v85 = vmul.f32 %v84, 1.442695
    %v86 = vpow.pop %v85
    %v87 = vsel %vm80, %v86, 0.0
    %88 = vadd.xlane.f32.xlu0 %v87
    %v89 = vpop.xlane.xlu0 %88
    %v90 = vsub.f32 %v72, %v83
    %v91 = vmul.f32 %v90, 1.442695
    %v92 = vpow.pop %v91
    %v93 = vrcp.pop %v89
    %v94 = vmul.f32 %v92, %v93
    %v95 = vsub.f32 0.0, %v72
    %v96 = vadd.f32 %v94, 1e-05
    %v97 = vlog2.pop %v96
    %v98 = vmul.f32 %v97, 0.6931472
    %100 = vrot.lane.b32.xlu0 %v98, 1
    %v101 = vpop.permute.xlu0 %100
    %v103 = vmul.f32 %v95, %v101
    %v104 = vsel %vm79, %v103, 0.0
    %v105 = vld [vmem:[#allocation2] sm:$0xff]
    %vm106 = vcmask 15368
    %v107 = vsel %vm106, %v104, 0.0
    %v108 = vrot.slane %v107, 4
    %v109 = vadd.f32 %v107, %v108
    %v110 = vrot.slane %v109, 2
    %v111 = vadd.f32 %v109, %v110
    %v112 = vrot.slane %v111, 1
    %v113 = vadd.f32 %v111, %v112
    %115 = vset.pattern.permute.xlu0 1
    %116 = vperm.xlu0 %115, %v113
    %v117 = vpop.permute.xlu0 %116
    %v119 = vadd.f32 %v105, %v117
    %120 = vst [vmem:[#allocation2] sm:$0xff] %v119
    // Predicated region
    $region14: #{tpu_custom_call.1} parent=1 // pred_check
      _
    $region15: #{tpu_custom_call.1} parent=1 // pred_check_branch
      %122 = sbr.rel (0) target = $region17
    $region16: #{tpu_custom_call.1} parent=1 // pred_region
      %s124 = ssub.s32 128, 128
      %125 = vsyncadd [#allocation3], %s124
      %s127 = sshll.u32 [#allocation2], 4
      %s128 = int_to_ptr.vmem [resolvable:$true] %s127
      %130 = dma.vmem_to_hbm [thread:$0]  %s128, 128, %s2, [#allocation3]
    $region17: #{tpu_custom_call.1} parent=1 // pred_fallthru
      _
    // Predicated region
    $region18: #{tpu_custom_call.1} parent=1 // pred_check
      _
    $region19: #{tpu_custom_call.1} parent=1 // pred_check_branch
      %132 = sbr.rel (0) target = $region21
    $region20: #{tpu_custom_call.1} parent=1 // pred_region
      %133 = dma.done [#allocation3], 128
    $region21: #{tpu_custom_call.1} parent=1 // pred_fallthru
      _
    %134 = vsyncpa [#allocation3], 1

</llo_original>
